<compile_context>
chip_gen: v5e
topology: v5e:2x2
jax: 0.10.0
libtpu: 0.0.40
codegen_flags: <defaults>
</compile_context>

<pallas_src>
import functools

import jax
import jax.numpy as jnp
from jax import lax
from jax.experimental import pallas as pl
from jax.experimental.pallas import tpu as pltpu

LANE = 128            # vreg lane width (fast, last axis)
SUBLANE = 8           # f32 sublane tiling unit
ROW_GRAN = 32         # lcm of f32(8) / bf16(16) / int8(32) sublane tiling
MAX_TILE_ROWS = 2048  # 2048x128 f32 block = 1 MiB/input; double-buffered ~4.5 MiB
MAX_CHUNK_ROWS = 512  # rows per inner-loop step (bounds in-kernel VMEM temporaries)
PAD_LOGIT = 1.0e4     # class-0 pad => d = -1e4 => ce = 0, 1-pt = 0 => zero loss


def _round_up(a, b):
    return -(-a // b) * b


def _focal_chunk(x0, x1, t, *, alpha, gamma):
    """Focal loss for one (rows, 128) lane-dense chunk -> (8, 128) partial sum."""
    x0 = x0.astype(jnp.float32)
    x1 = x1.astype(jnp.float32)
    t = t.astype(jnp.int32).astype(jnp.float32)       # int8 -> i32 -> f32 (safe lowering)

    # Binary cross entropy via the softplus/sigmoid identities
    # (1 exp + 1 log + 1 div instead of 2 exp + 1 log + 1 exp):
    #   d  = logit[other] - logit[target] = (x1 - x0) * (1 - 2 t)
    #   ce = softplus(d) = max(d, 0) + log(1 + exp(-|d|))
    #   pt = exp(-ce) = sigmoid(-d)   =>   1 - pt = sigmoid(d)
    d = (x1 - x0) * (1.0 - 2.0 * t)
    e = jnp.exp(-jnp.abs(d))                          # EUP
    log_term = jnp.log(1.0 + e)                       # EUP (e in [0,1] -> log1p not needed)
    r = 1.0 / (1.0 + e)                               # exact reciprocal (accuracy)
    ce = jnp.maximum(d, 0.0) + log_term
    one_m_pt = jnp.where(d >= 0.0, r, e * r)          # = 1 - pt, cancellation-free

    at = alpha + t * (1.0 - 2.0 * alpha)              # [alpha, 1 - alpha][target]
    g = float(gamma)
    if g.is_integer() and g >= 0:
        gi = int(g)
        mod = jnp.ones_like(one_m_pt)
        for _ in range(gi):                           # VPU multiplies, no EUP pow
            mod = mod * one_m_pt
    else:
        # Non-integer gamma: clamp base away from 0 so log stays finite.
        # TODO(synk): torch would NaN on a tiny negative base; we intentionally clamp.
        mod = jnp.exp(g * jnp.log(jnp.maximum(one_m_pt, 1e-30)))

    f = at * mod * ce
    rows = f.shape[0]
    return f.reshape(rows // SUBLANE, SUBLANE, LANE).sum(axis=0)


def _focal_loss_kernel(x0_ref, x1_ref, tgt_ref, out_ref, *, alpha, gamma, chunk, n_chunks):
    """One (tile_rows, 128) slab of samples; emits a lane-dense (8, 128) partial sum."""
    if n_chunks == 1:
        out_ref[...] = _focal_chunk(x0_ref[...], x1_ref[...], tgt_ref[...],
                                    alpha=alpha, gamma=gamma)
    else:
        def body(c, acc):
            r0 = pl.multiple_of(c * chunk, chunk)
            sl = pl.ds(r0, chunk)
            return acc + _focal_chunk(x0_ref[sl, :], x1_ref[sl, :], tgt_ref[sl, :],
                                      alpha=alpha, gamma=gamma)

        out_ref[...] = lax.fori_loop(0, n_chunks, body,
                                     jnp.zeros((SUBLANE, LANE), jnp.float32))


@functools.partial(jax.jit, static_argnames=("alpha", "gamma"))
def weighted_focal_loss(inputs, targets, alpha=0.25, gamma=2):
    """inputs: (N, 2) float logits, targets: (N,) ints in {0, 1}. Returns mean focal loss."""
    n, c = inputs.shape
    assert c == 2, "WeightedFocalLoss is binary (alpha vector = [alpha, 1 - alpha])"

    # ---- tiling over the lane-dense sample axis -----------------------------
    rows_min = _round_up(pl.cdiv(n, LANE), ROW_GRAN)
    if rows_min <= 2 * ROW_GRAN:
        tile_rows = rows_min                          # tiny problem: one small tile
    else:
        # >= 2 tiles so both v7x TensorCores get work; cap tile at ~1 MiB/input
        tile_rows = min(MAX_TILE_ROWS, _round_up(pl.cdiv(rows_min, 2), ROW_GRAN))
    rows_total = _round_up(rows_min, tile_rows)
    num_tiles = rows_total // tile_rows
    pad = rows_total * LANE - n

    # Inner-loop chunk: largest power-of-two divisor of the tile (tile_rows is a
    # multiple of 32, so this always succeeds).
    chunk = next(s for s in (MAX_CHUNK_ROWS, 256, 128, 64, 32) if tile_rows % s == 0)
    n_chunks = tile_rows // chunk

    # ---- lane-dense repack; pad constants chosen so padded lanes give 0 loss -
    x0 = jnp.pad(inputs[:, 0], (0, pad),
                 constant_values=PAD_LOGIT).reshape(rows_total, LANE)
    x1 = jnp.pad(inputs[:, 1], (0, pad)).reshape(rows_total, LANE)
    tgt = jnp.pad(targets.astype(jnp.int8), (0, pad)).reshape(rows_total, LANE)

    kernel = functools.partial(_focal_loss_kernel, alpha=float(alpha), gamma=gamma,
                               chunk=chunk, n_chunks=n_chunks)
    in_spec = pl.BlockSpec((tile_rows, LANE), lambda i: (i, 0))
    partials = pl.pallas_call(
        kernel,
        out_shape=jax.ShapeDtypeStruct((num_tiles * SUBLANE, LANE), jnp.float32),
        grid=(num_tiles,),
        in_specs=[in_spec, in_spec, in_spec],
        out_specs=pl.BlockSpec((SUBLANE, LANE), lambda i: (i, 0)),
        compiler_params=pltpu.CompilerParams(
            dimension_semantics=("parallel",)),       # independent tiles -> 2 TCs on v7x
    )(x0, x1, tgt)

    return jnp.sum(partials) / jnp.float32(n)


def _reference(inputs, targets, alpha=0.25, gamma=2):
    logits = inputs.astype(jnp.float32)
    lse = jax.scipy.special.logsumexp(logits, axis=-1)
    logit_t = jnp.take_along_axis(
        logits, targets[:, None].astype(jnp.int32), axis=-1)[:, 0]
    ce = lse - logit_t
    at = jnp.where(targets == 0, alpha, 1.0 - alpha).astype(jnp.float32)
    pt = jnp.exp(-ce)
    return jnp.mean(at * (1.0 - pt) ** gamma * ce)


if __name__ == "__main__":
    key = jax.random.PRNGKey(0)
    k1, k2, k3, k4 = jax.random.split(key, 4)

    # Small case (typical batch of binary logits), module defaults alpha=0.25, gamma=2.
    N = 300
    inputs = jax.random.normal(k1, (N, 2), dtype=jnp.float32)
    targets = jax.random.randint(k2, (N,), 0, 2, dtype=jnp.int32)
    loss = jax.block_until_ready(weighted_focal_loss(inputs, targets, alpha=0.25, gamma=2))
    ref = _reference(inputs, targets, alpha=0.25, gamma=2)
    assert jnp.allclose(loss, ref, rtol=1e-5, atol=1e-6), (loss, ref)

    # Larger case: exercises the multi-tile grid, the in-kernel chunk loop and padding.
    N2 = 20_000
    inputs2 = jax.random.normal(k3, (N2, 2), dtype=jnp.float32)
    targets2 = jax.random.randint(k4, (N2,), 0, 2, dtype=jnp.int32)
    loss2 = jax.block_until_ready(weighted_focal_loss(inputs2, targets2))
    ref2 = _reference(inputs2, targets2)
    assert jnp.allclose(loss2, ref2, rtol=3e-5, atol=1e-6), (loss2, ref2)

    print("KERNEL_OK")
</pallas_src>

<mosaic_0001>
module attributes {stable_mosaic.version = 11 : i64} {
  func.func @_focal_loss_kernel(%arg0: i32, %arg1: memref<32x128xf32, #tpu.memory_space<vmem>>, %arg2: memref<32x128xf32, #tpu.memory_space<vmem>>, %arg3: memref<32x128xi8, #tpu.memory_space<vmem>>, %arg4: memref<8x128xf32, #tpu.memory_space<vmem>>) attributes {dimension_semantics = [#tpu.dimension_semantics<parallel>], iteration_bounds = array<i64: 1>, scalar_prefetch = 0 : i64, scratch_operands = 0 : i64, tpu.core_type = #tpu.core_type<tc>, window_params = [{transform_indices = @transform_0, window_bounds = array<i64: 32, 128>}, {transform_indices = @transform_1, window_bounds = array<i64: 32, 128>}, {transform_indices = @transform_2, window_bounds = array<i64: 32, 128>}, {transform_indices = @transform_3, window_bounds = array<i64: 8, 128>}]} {
    %c0 = arith.constant 0 : index
    %c0_0 = arith.constant 0 : index
    %0 = vector.load %arg1[%c0, %c0_0] : memref<32x128xf32, #tpu.memory_space<vmem>>, vector<32x128xf32>
    %c0_1 = arith.constant 0 : index
    %c0_2 = arith.constant 0 : index
    %1 = vector.load %arg2[%c0_1, %c0_2] : memref<32x128xf32, #tpu.memory_space<vmem>>, vector<32x128xf32>
    %c0_3 = arith.constant 0 : index
    %c0_4 = arith.constant 0 : index
    %2 = vector.load %arg3[%c0_3, %c0_4] : memref<32x128xi8, #tpu.memory_space<vmem>>, vector<32x128xi8>
    %3 = arith.extsi %2 : vector<32x128xi8> to vector<32x128xi32>
    %4 = arith.sitofp %3 : vector<32x128xi32> to vector<32x128xf32>
    %5 = arith.subf %1, %0 : vector<32x128xf32>
    %cst = arith.constant 2.000000e+00 : f32
    %6 = vector.broadcast %cst : f32 to vector<32x128xf32>
    %7 = arith.mulf %6, %4 : vector<32x128xf32>
    %cst_5 = arith.constant 1.000000e+00 : f32
    %8 = vector.broadcast %cst_5 : f32 to vector<32x128xf32>
    %9 = arith.subf %8, %7 : vector<32x128xf32>
    %10 = arith.mulf %5, %9 : vector<32x128xf32>
    %11 = math.absf %10 : vector<32x128xf32>
    %cst_6 = arith.constant 0.000000e+00 : f32
    %12 = vector.broadcast %cst_6 : f32 to vector<32x128xf32>
    %13 = arith.subf %12, %11 : vector<32x128xf32>
    %14 = math.exp %13 : vector<32x128xf32>
    %cst_7 = arith.constant 1.000000e+00 : f32
    %15 = vector.broadcast %cst_7 : f32 to vector<32x128xf32>
    %16 = arith.addf %15, %14 : vector<32x128xf32>
    %17 = math.log %16 : vector<32x128xf32>
    %cst_8 = arith.constant 1.000000e+00 : f32
    %18 = vector.broadcast %cst_8 : f32 to vector<32x128xf32>
    %19 = arith.addf %18, %14 : vector<32x128xf32>
    %cst_9 = arith.constant 1.000000e+00 : f32
    %20 = vector.broadcast %cst_9 : f32 to vector<32x128xf32>
    %21 = arith.divf %20, %19 : vector<32x128xf32>
    %cst_10 = arith.constant 0.000000e+00 : f32
    %22 = vector.broadcast %cst_10 : f32 to vector<32x128xf32>
    %23 = arith.maximumf %10, %22 : vector<32x128xf32>
    %24 = arith.addf %23, %17 : vector<32x128xf32>
    %cst_11 = arith.constant 0.000000e+00 : f32
    %25 = vector.broadcast %cst_11 : f32 to vector<32x128xf32>
    %26 = arith.cmpf oge, %10, %25 : vector<32x128xf32>
    %27 = arith.mulf %14, %21 : vector<32x128xf32>
    %28 = arith.select %26, %21, %27 : vector<32x128xi1>, vector<32x128xf32>
    %cst_12 = arith.constant 5.000000e-01 : f32
    %29 = vector.broadcast %cst_12 : f32 to vector<32x128xf32>
    %30 = arith.mulf %4, %29 : vector<32x128xf32>
    %cst_13 = arith.constant 2.500000e-01 : f32
    %31 = vector.broadcast %cst_13 : f32 to vector<32x128xf32>
    %32 = arith.addf %31, %30 : vector<32x128xf32>
    %cst_14 = arith.constant 1.000000e+00 : f32
    %33 = vector.broadcast %cst_14 : f32 to vector<32x128xf32>
    %34 = arith.mulf %33, %28 : vector<32x128xf32>
    %35 = arith.mulf %34, %28 : vector<32x128xf32>
    %36 = arith.mulf %32, %35 : vector<32x128xf32>
    %37 = arith.mulf %36, %24 : vector<32x128xf32>
    %38 = vector.shape_cast %37 : vector<32x128xf32> to vector<4x8x128xf32>
    %cst_15 = arith.constant dense<0.000000e+00> : vector<8x128xf32>
    %39 = vector.multi_reduction <add>, %38, %cst_15 [0] : vector<4x8x128xf32> to vector<8x128xf32>
    %c0_16 = arith.constant 0 : index
    %c0_17 = arith.constant 0 : index
    %40 = vector.load %arg4[%c0_16, %c0_17] : memref<8x128xf32, #tpu.memory_space<vmem>>, vector<8x128xf32>
    tpu.vector_store %arg4[%c0_16, %c0_17], %39 {strides = array<i32>} : memref<8x128xf32, #tpu.memory_space<vmem>>, vector<8x128xf32>,
    return
  }
  func.func @transform_0(%arg0: i32) -> (i32, i32) {
    %c0_i32 = arith.constant 0 : i32
    %c0_i32_0 = arith.constant 0 : i32
    return %arg0, %c0_i32 : i32, i32
  }
  func.func @transform_1(%arg0: i32) -> (i32, i32) {
    %c0_i32 = arith.constant 0 : i32
    %c0_i32_0 = arith.constant 0 : i32
    return %arg0, %c0_i32 : i32, i32
  }
  func.func @transform_2(%arg0: i32) -> (i32, i32) {
    %c0_i32 = arith.constant 0 : i32
    %c0_i32_0 = arith.constant 0 : i32
    return %arg0, %c0_i32 : i32, i32
  }
  func.func @transform_3(%arg0: i32) -> (i32, i32) {
    %c0_i32 = arith.constant 0 : i32
    %c0_i32_0 = arith.constant 0 : i32
    return %arg0, %c0_i32 : i32, i32
  }
}

</mosaic_0001>

<llo_original>
// kernel: weighted_focal_loss.1
$region0: #{weighted_focal_loss.1}
  #allocation0 [shape = 'u32[]', space=smem, size = 0x4, offset = 0x4, fixed_abs, tag = 'smem constant byte address 0x4 - core index']
  #allocation1 [shape = 'u32[72,128]{1,0:T(1,128)}', space=vmem, size = 0x9000, scoped, tag = 'internal scratch']
  %s0 = inlined_call_operand.vmem [shape: f32[32,128], index: 0, kind: input, shape index: {}]
  %s1 = inlined_call_operand.vmem [shape: f32[32,128], index: 1, kind: input, shape index: {}]
  %s2 = inlined_call_operand.vmem [shape: s8[32,128], index: 2, kind: input, shape index: {}]
  %s3 = inlined_call_operand.vmem [shape: f32[8,128], index: 3, kind: output, shape index: {}]
  %s4 = sld [smem:[#allocation0]]
  $region22: #{weighted_focal_loss.1} parent=0
    _
  %s6 = ssub.s32 1, %s4
  %s7 = scalar_select 0, %s6, %s4
  // Predicated region
  $region2: #{weighted_focal_loss.1} parent=0 // pred_check
    _
  $region3: #{weighted_focal_loss.1} parent=0 // pred_check_branch
    %9 = sbr.rel (0) target = $region5
  $region4: #{weighted_focal_loss.1} parent=0 // pred_region
    _
  $region5: #{weighted_focal_loss.1} parent=0 // pred_fallthru
    _
  // Predicated region
  $region6: #{weighted_focal_loss.1} parent=0 // pred_check
    _
  $region7: #{weighted_focal_loss.1} parent=0 // pred_check_branch
    %11 = sbr.rel (0) target = $region9
  $region8: #{weighted_focal_loss.1} parent=0 // pred_region
    _
  $region9: #{weighted_focal_loss.1} parent=0 // pred_fallthru
    _
  // Predicated region
  $region10: #{weighted_focal_loss.1} parent=0 // pred_check
    _
  $region11: #{weighted_focal_loss.1} parent=0 // pred_check_branch
    %13 = sbr.rel (0) target = $region13
  $region12: #{weighted_focal_loss.1} parent=0 // pred_region
    _
  $region13: #{weighted_focal_loss.1} parent=0 // pred_fallthru
    _
  %v14 = vld [vmem:[%s0] sm:$0xff]
  %v15 = vld [vmem:[%s0 + $0x8] sm:$0xff]
  %v16 = vld [vmem:[%s0 + $0x10] sm:$0xff]
  %v17 = vld [vmem:[%s0 + $0x18] sm:$0xff]
  %v18 = vld [vmem:[%s1] sm:$0xff]
  %v19 = vld [vmem:[%s1 + $0x8] sm:$0xff]
  %v20 = vld [vmem:[%s1 + $0x10] sm:$0xff]
  %v21 = vld [vmem:[%s1 + $0x18] sm:$0xff]
  %v22 = vld [vmem:[%s2] sm:$0xff]
  %v23 = vunpack.c.0.s8 %v22
  %v24 = vunpack.c.1.s8 %v22
  %v25 = vunpack.c.2.s8 %v22
  %v26 = vunpack.c.3.s8 %v22
  %v27 = vcvt.s32.f32 %v23
  %v28 = vcvt.s32.f32 %v24
  %v29 = vcvt.s32.f32 %v25
  %v30 = vcvt.s32.f32 %v26
  %v31 = vsub.f32 %v18, %v14
  %v32 = vsub.f32 %v19, %v15
  %v33 = vsub.f32 %v20, %v16
  %v34 = vsub.f32 %v21, %v17
  %v35 = vmul.f32 %v27, 2.0
  %v36 = vmul.f32 %v28, 2.0
  %v37 = vmul.f32 %v29, 2.0
  %v38 = vmul.f32 %v30, 2.0
  %v39 = vsub.f32 1.0, %v35
  %v40 = vsub.f32 1.0, %v36
  %v41 = vsub.f32 1.0, %v37
  %v42 = vsub.f32 1.0, %v38
  %v43 = vmul.f32 %v31, %v39
  %v44 = vmul.f32 %v32, %v40
  %v45 = vmul.f32 %v33, %v41
  %v46 = vmul.f32 %v34, %v42
  %v47 = vand.u32 2147483647, %v43
  %v48 = vand.u32 2147483647, %v44
  %v49 = vand.u32 2147483647, %v45
  %v50 = vand.u32 2147483647, %v46
  %v51 = vsub.f32 0.0, %v47
  %v52 = vsub.f32 0.0, %v48
  %v53 = vsub.f32 0.0, %v49
  %v54 = vsub.f32 0.0, %v50
  %v55 = vmul.f32 %v51, 1.442695
  %v56 = vpow.pop %v55
  %v57 = vmul.f32 %v52, 1.442695
  %v58 = vpow.pop %v57
  %v59 = vmul.f32 %v53, 1.442695
  %v60 = vpow.pop %v59
  %v61 = vmul.f32 %v54, 1.442695
  %v62 = vpow.pop %v61
  %v63 = vadd.f32 %v56, 1.0
  %v64 = vadd.f32 %v58, 1.0
  %v65 = vadd.f32 %v60, 1.0
  %v66 = vadd.f32 %v62, 1.0
  %v67 = vlog2.pop %v63
  %v68 = vmul.f32 %v67, 0.6931472
  %v69 = vlog2.pop %v64
  %v70 = vmul.f32 %v69, 0.6931472
  %v71 = vlog2.pop %v65
  %v72 = vmul.f32 %v71, 0.6931472
  %v73 = vlog2.pop %v66
  %v74 = vmul.f32 %v73, 0.6931472
  %v75 = vrcp.pop %v63
  %v76 = vmul.f32 %v63, %v75
  %v77 = vsub.f32 1.0, %v76
  %v78 = vmul.f32 %v75, %v77
  %v79 = vadd.f32 %v75, %v78
  %vm80 = vweird.f32 %v63
  %vm81 = vweird.f32 %v75
  %vm82 = vmor %vm80, %vm81
  %v83 = vsel %vm82, %v75, %v79
  %v84 = vand.u32 2147483647, %v63
  %vm85 = vcmp.eq.f32.partialorder %v84, 8.507059e+37
  %v86 = vand.u32 %v63, 2147483648
  %v87 = vor.u32 1.1754944e-38, %v86
  %v88 = vsel %vm85, %v87, %v83
  %v89 = vmul.f32 1.0, %v88
  %v90 = vrcp.pop %v64
  %v91 = vmul.f32 %v64, %v90
  %v92 = vsub.f32 1.0, %v91
  %v93 = vmul.f32 %v90, %v92
  %v94 = vadd.f32 %v90, %v93
  %vm95 = vweird.f32 %v64
  %vm96 = vweird.f32 %v90
  %vm97 = vmor %vm95, %vm96
  %v98 = vsel %vm97, %v90, %v94
  %v99 = vand.u32 2147483647, %v64
  %vm100 = vcmp.eq.f32.partialorder %v99, 8.507059e+37
  %v101 = vand.u32 %v64, 2147483648
  %v102 = vor.u32 1.1754944e-38, %v101
  %v103 = vsel %vm100, %v102, %v98
  %v104 = vmul.f32 1.0, %v103
  %v105 = vrcp.pop %v65
  %v106 = vmul.f32 %v65, %v105
  %v107 = vsub.f32 1.0, %v106
  %v108 = vmul.f32 %v105, %v107
  %v109 = vadd.f32 %v105, %v108
  %vm110 = vweird.f32 %v65
  %vm111 = vweird.f32 %v105
  %vm112 = vmor %vm110, %vm111
  %v113 = vsel %vm112, %v105, %v109
  %v114 = vand.u32 2147483647, %v65
  %vm115 = vcmp.eq.f32.partialorder %v114, 8.507059e+37
  %v116 = vand.u32 %v65, 2147483648
  %v117 = vor.u32 1.1754944e-38, %v116
  %v118 = vsel %vm115, %v117, %v113
  %v119 = vmul.f32 1.0, %v118
  %v120 = vrcp.pop %v66
  %v121 = vmul.f32 %v66, %v120
  %v122 = vsub.f32 1.0, %v121
  %v123 = vmul.f32 %v120, %v122
  %v124 = vadd.f32 %v120, %v123
  %vm125 = vweird.f32 %v66
  %vm126 = vweird.f32 %v120
  %vm127 = vmor %vm125, %vm126
  %v128 = vsel %vm127, %v120, %v124
  %v129 = vand.u32 2147483647, %v66
  %vm130 = vcmp.eq.f32.partialorder %v129, 8.507059e+37
  %v131 = vand.u32 %v66, 2147483648
  %v132 = vor.u32 1.1754944e-38, %v131
  %v133 = vsel %vm130, %v132, %v128
  %v134 = vmul.f32 1.0, %v133
  %v135 = vmax.f32 %v43, 0.0
  %v136 = vmax.f32 %v44, 0.0
  %v137 = vmax.f32 %v45, 0.0
  %v138 = vmax.f32 %v46, 0.0
  %v139 = vadd.f32 %v135, %v68
  %v140 = vadd.f32 %v136, %v70
  %v141 = vadd.f32 %v137, %v72
  %v142 = vadd.f32 %v138, %v74
  %vm143 = vcmp.ge.f32.partialorder %v43, 0.0
  %vm144 = vcmp.ge.f32.partialorder %v44, 0.0
  %vm145 = vcmp.ge.f32.partialorder %v45, 0.0
  %vm146 = vcmp.ge.f32.partialorder %v46, 0.0
  %v147 = vmul.f32 %v56, %v89
  %v148 = vmul.f32 %v58, %v104
  %v149 = vmul.f32 %v60, %v119
  %v150 = vmul.f32 %v62, %v134
  %v151 = vsel %vm143, %v89, %v147
  %v152 = vsel %vm144, %v104, %v148
  %v153 = vsel %vm145, %v119, %v149
  %v154 = vsel %vm146, %v134, %v150
  %v155 = vmul.f32 %v27, 0.5
  %v156 = vmul.f32 %v28, 0.5
  %v157 = vmul.f32 %v29, 0.5
  %v158 = vmul.f32 %v30, 0.5
  %v159 = vadd.f32 %v155, 0.25
  %v160 = vadd.f32 %v156, 0.25
  %v161 = vadd.f32 %v157, 0.25
  %v162 = vadd.f32 %v158, 0.25
  %v163 = vmul.f32 %v151, %v151
  %v164 = vmul.f32 %v152, %v152
  %v165 = vmul.f32 %v153, %v153
  %v166 = vmul.f32 %v154, %v154
  %v167 = vmul.f32 %v159, %v163
  %v168 = vmul.f32 %v160, %v164
  %v169 = vmul.f32 %v161, %v165
  %v170 = vmul.f32 %v162, %v166
  %v171 = vmul.f32 %v167, %v139
  %v172 = vmul.f32 %v168, %v140
  %v173 = vmul.f32 %v169, %v141
  %v174 = vmul.f32 %v170, %v142
  %v175 = vadd.f32 %v171, %v172
  %v176 = vadd.f32 %v175, %v173
  %v177 = vadd.f32 %v176, %v174
  %178 = vst [vmem:[%s3] sm:$0xff] %v177
  // Predicated region
  $region14: #{weighted_focal_loss.1} parent=0 // pred_check
    _
  $region15: #{weighted_focal_loss.1} parent=0 // pred_check_branch
    %180 = sbr.rel (0) target = $region17
  $region16: #{weighted_focal_loss.1} parent=0 // pred_region
    _
  $region17: #{weighted_focal_loss.1} parent=0 // pred_fallthru
    _
  // Predicated region
  $region18: #{weighted_focal_loss.1} parent=0 // pred_check
    _
  $region19: #{weighted_focal_loss.1} parent=0 // pred_check_branch
    %182 = sbr.rel (0) target = $region21
  $region20: #{weighted_focal_loss.1} parent=0 // pred_region
    _
  $region21: #{weighted_focal_loss.1} parent=0 // pred_fallthru
    _

</llo_original>
